<compile_context>
chip_gen: v7x
topology: tpu7x:2x2x1
jax: 0.10.0
libtpu: 0.0.40
codegen_flags: <defaults>
</compile_context>

<pallas_src>
import jax
import jax.numpy as jnp
from jax import lax
from jax.experimental import pallas as pl
from jax.experimental.pallas import tpu as pltpu


def _round_up(x: int, m: int) -> int:
    return (x + m - 1) // m * m


def _cdiv(a: int, b: int) -> int:
    return (a + b - 1) // b


def one_layer_nn_kernel(b_ref, x_ref, w_ref, o_ref):
    # b_ref: (1, 1)     f32 SMEM  -- bias scalar
    # x_ref: (tr, L)    f32 VMEM  -- one tile of lane-packed rows (L = pack*D)
    # w_ref: (pack, L)  f32 VMEM  -- block-diagonal replicated weight (resident)
    # o_ref: (pack, tr) f32 VMEM  -- lane-dense output tile
    #
    # z[j, r] = sum_l w_rep[j, l] * x_packed[r, l] = sum_d w[d] * x[pack*r + j, d]
    # Same A @ B.T (both-minor-dims) contraction flash attention uses for
    # q @ k.T: the MXU loads the rhs transposed, no XLU pass over the big tile.
    z = lax.dot_general(
        w_ref[...], x_ref[...],
        dimension_numbers=(((1,), (1,)), ((), ())),
        preferred_element_type=jnp.float32,
        precision=lax.Precision.HIGHEST,   # MXU has enormous slack here (item 9)
    )                                       # (pack, tr), lane-dense
    o_ref[...] = jax.nn.sigmoid(z + b_ref[0, 0]).astype(o_ref.dtype)


def one_layer_nn(x, weight, bias, *,
                 target_rows_per_step=8192,   # packed rows/step -> ~4 MiB of x DMA
                 min_steps=4,                  # >= 2 per TC on v7x when B allows
                 xla_fallback_batch=0):
    """sigmoid(x @ weight.T + bias)  ==  OneLayerNN.forward.

    x:      (B, D) float32
    weight: (1, D) float32  (PyTorch nn.Linear(D, 1) weight layout)
    bias:   (1,)   float32
    returns (B, 1) float32
    """
    B, D = x.shape
    assert weight.shape == (1, D), "expected nn.Linear(D, 1) weight layout (1, D)"

    if B <= xla_fallback_batch:
        # Review item 10: for tiny batches the pallas_call launch dwarfs the
        # work.  Disabled by default so the kernel path is always exercised.
        return jax.nn.sigmoid(
            jnp.dot(x.astype(jnp.float32), weight.T.astype(jnp.float32),
                    precision=lax.Precision.HIGHEST) + bias.astype(jnp.float32))

    x = x.astype(jnp.float32)
    w = weight.astype(jnp.float32)
    b_smem = bias.reshape(1, 1).astype(jnp.float32)

    # ---- Lane packing: fold `pack` consecutive batch rows into one 128-wide row.
    pack = 128 // D if (D <= 128 and 128 % D == 0) else 1
    b_pad = _round_up(B, pack)
    if b_pad != B:
        # Only when B % pack != 0: pads at most pack-1 rows (one extra copy of
        # x; typical batch sizes avoid this branch entirely).
        x = jnp.pad(x, ((0, b_pad - B), (0, 0)))
    L = pack * D                    # 128 when packing, D otherwise
    R = b_pad // pack               # packed rows
    x_packed = x.reshape(R, L)      # contiguous row-major reshape: free

    # Block-diagonal replicated weight: w_rep[j, j*D + d] = w[0, d].
    w_rep = jnp.kron(jnp.eye(pack, dtype=jnp.float32), w)   # (pack, L)

    # ---- Tile selection (packed rows per grid step).
    tr = _round_up(max(1, _cdiv(R, min_steps)), 128)   # aim for >= min_steps steps
    tr = min(tr, target_rows_per_step)
    if tr >= R:
        tr = R           # single full-extent block: always layout-legal
    num_tiles = _cdiv(R, tr)
    # Non-divisible R: last x block reads past the array end (pipeline pads);
    # the matching out-of-range output columns are dropped.  Safe because each
    # output column depends only on its own packed row.

    out = pl.pallas_call(
        one_layer_nn_kernel,
        out_shape=jax.ShapeDtypeStruct((pack, R), jnp.float32),
        grid=(num_tiles,),
        in_specs=[
            # bias: whole (1,1) array in SMEM, read as a scalar.
            pl.BlockSpec(memory_space=pltpu.MemorySpace.SMEM),
            # x: one (tr, L) packed tile per step (auto double-buffered,
            # fully contiguous HBM rows).  TODO(synk): sweep pl.Buffered(3)
            # here if profiling shows exposed DMA issue latency at roofline.
            pl.BlockSpec((tr, L), lambda i: (i, 0)),
            # weight: same tiny (pack, L) block every step -> stays resident.
            pl.BlockSpec((pack, L), lambda i: (0, 0)),
        ],
        # Lane-dense (pack, tr) output tile.
        out_specs=pl.BlockSpec((pack, tr), lambda i: (0, i)),
        compiler_params=pltpu.CompilerParams(
            dimension_semantics=("parallel",),   # shard batch tiles across TCs
        ),
    )(b_smem, x_packed, w_rep)

    # Un-interleave the tiny output: out[j, r] -> batch row pack*r + j.
    return out.T.reshape(b_pad, 1)[:B]


if __name__ == "__main__":
    key = jax.random.PRNGKey(0)
    kx, kw, kb = jax.random.split(key, 3)

    batch = 8
    input_dim = 32

    # Deterministic synthetic input + nn.Linear(input_dim, 1)-shaped params.
    x = jax.random.normal(kx, (batch, input_dim), dtype=jnp.float32)
    bound = 1.0 / (input_dim ** 0.5)
    weight = jax.random.uniform(kw, (1, input_dim), dtype=jnp.float32,
                                minval=-bound, maxval=bound)
    bias = jax.random.uniform(kb, (1,), dtype=jnp.float32,
                              minval=-bound, maxval=bound)

    out = one_layer_nn(x, weight, bias)
    out = jax.block_until_ready(out)

    # Reference: same math as the PyTorch forward (full-f32 elementwise sum).
    ref = jax.nn.sigmoid(jnp.sum(x * weight, axis=1, keepdims=True) + bias)
    assert out.shape == (batch, 1)
    assert jnp.allclose(out, ref, atol=1e-5, rtol=1e-5), (
        "max abs err = %e" % float(jnp.max(jnp.abs(out - ref))))

    print("KERNEL_OK")
</pallas_src>

<mosaic_0001>
module attributes {stable_mosaic.version = 11 : i64} {
  func.func @one_layer_nn_kernel(%arg0: i32, %arg1: memref<1x1xf32, #tpu.memory_space<smem>>, %arg2: memref<2x128xf32, #tpu.memory_space<vmem>>, %arg3: memref<4x128xf32, #tpu.memory_space<vmem>>, %arg4: memref<4x2xf32, #tpu.memory_space<vmem>>) attributes {dimension_semantics = [#tpu.dimension_semantics<parallel>], iteration_bounds = array<i64: 1>, scalar_prefetch = 0 : i64, scratch_operands = 0 : i64, tpu.core_type = #tpu.core_type<tc>, window_params = [{transform_indices = @transform_0, window_bounds = array<i64: 1, 1>}, {transform_indices = @transform_1, window_bounds = array<i64: 2, 128>}, {pipeline_mode = #tpu.pipeline_mode<synchronous>, transform_indices = @transform_2, window_bounds = array<i64: 4, 128>}, {transform_indices = @transform_3, window_bounds = array<i64: 4, 2>}]} {
    %c0 = arith.constant 0 : index
    %c0_0 = arith.constant 0 : index
    %0 = vector.load %arg3[%c0, %c0_0] : memref<4x128xf32, #tpu.memory_space<vmem>>, vector<4x128xf32>
    %c0_1 = arith.constant 0 : index
    %c0_2 = arith.constant 0 : index
    %1 = vector.load %arg2[%c0_1, %c0_2] : memref<2x128xf32, #tpu.memory_space<vmem>>, vector<2x128xf32>
    %cst = arith.constant dense<0.000000e+00> : vector<4x2xf32>
    %2 = tpu.matmul %0, %1, %cst {dimension_numbers = #tpu.dot_dimension_numbers<[1], [1], [0], [0], [0, 0, 1, 0], [], []>, precision = #tpu.contract_precision<fp32>} : vector<4x128xf32>, vector<2x128xf32>, vector<4x2xf32> -> vector<4x2xf32>
    %c0_3 = arith.constant 0 : index
    %c0_4 = arith.constant 0 : index
    %3 = memref.load %arg1[%c0_3, %c0_4] : memref<1x1xf32, #tpu.memory_space<smem>>
    %4 = vector.broadcast %3 : f32 to vector<4x2xf32>
    %5 = arith.addf %2, %4 : vector<4x2xf32>
    %6 = arith.negf %5 : vector<4x2xf32>
    %7 = math.exp %6 : vector<4x2xf32>
    %cst_5 = arith.constant 1.000000e+00 : f32
    %8 = vector.broadcast %cst_5 : f32 to vector<4x2xf32>
    %9 = arith.addf %8, %7 : vector<4x2xf32>
    %10 = arith.divf %8, %9 : vector<4x2xf32>
    %c0_6 = arith.constant 0 : index
    %c0_7 = arith.constant 0 : index
    %11 = vector.load %arg4[%c0_6, %c0_7] : memref<4x2xf32, #tpu.memory_space<vmem>>, vector<4x2xf32>
    tpu.vector_store %arg4[%c0_6, %c0_7], %10 {strides = array<i32>} : memref<4x2xf32, #tpu.memory_space<vmem>>, vector<4x2xf32>,
    return
  }
  func.func @transform_0(%arg0: i32) -> (i32, i32) {
    %c0_i32 = arith.constant 0 : i32
    %c0_i32_0 = arith.constant 0 : i32
    %c0_i32_1 = arith.constant 0 : i32
    return %c0_i32, %c0_i32_0 : i32, i32
  }
  func.func @transform_1(%arg0: i32) -> (i32, i32) {
    %c0_i32 = arith.constant 0 : i32
    %c0_i32_0 = arith.constant 0 : i32
    return %arg0, %c0_i32 : i32, i32
  }
  func.func @transform_2(%arg0: i32) -> (i32, i32) {
    %c0_i32 = arith.constant 0 : i32
    %c0_i32_0 = arith.constant 0 : i32
    %c0_i32_1 = arith.constant 0 : i32
    return %c0_i32, %c0_i32_0 : i32, i32
  }
  func.func @transform_3(%arg0: i32) -> (i32, i32) {
    %c0_i32 = arith.constant 0 : i32
    %c0_i32_0 = arith.constant 0 : i32
    return %c0_i32, %arg0 : i32, i32
  }
}

</mosaic_0001>

<llo_original>
// kernel: tpu_custom_call.1
$region0: #{tpu_custom_call.1}
  #allocation0 [shape = 'u32[]', space=smem, size = 0x4, offset = 0x4, fixed_abs, tag = 'smem constant byte address 0x4 - core index']
  #allocation1 [shape = 'u32[144,128]{1,0:T(1,128)}', space=vmem, size = 0x12000, scoped, tag = 'internal scratch']
  #allocation2 [shape = 'f32[1,1]{1,0:T(1,128)S(6)}', space=smem, size = 0x200, scoped, tag = 'scoped memory for tpu_custom_call.1']
  %s0 = inlined_call_operand.<no memory space> [shape: f32[1,1], index: 0, kind: input, shape index: {}]
  %s1 = inlined_call_operand.vmem [shape: f32[2,128], index: 1, kind: input, shape index: {}]
  %s2 = inlined_call_operand.vmem [shape: f32[4,128], index: 2, kind: input, shape index: {}]
  %s3 = inlined_call_operand.vmem [shape: f32[4,2], index: 3, kind: output, shape index: {}]
  %s4 = sld [smem:[#allocation0]]
  $region22: #{tpu_custom_call.1} parent=0
    _
  %s6 = ssub.s32 1, %s4
  %s7 = scalar_select 0, %s6, %s4
  %8 = sst [smem:[#allocation2]] %s0
  // Predicated region
  $region2: #{tpu_custom_call.1} parent=0 // pred_check
    _
  $region3: #{tpu_custom_call.1} parent=0 // pred_check_branch
    %10 = sbr.rel (0) target = $region5
  $region4: #{tpu_custom_call.1} parent=0 // pred_region
    _
  $region5: #{tpu_custom_call.1} parent=0 // pred_fallthru
    _
  // Predicated region
  $region6: #{tpu_custom_call.1} parent=0 // pred_check
    _
  $region7: #{tpu_custom_call.1} parent=0 // pred_check_branch
    %12 = sbr.rel (0) target = $region9
  $region8: #{tpu_custom_call.1} parent=0 // pred_region
    _
  $region9: #{tpu_custom_call.1} parent=0 // pred_fallthru
    _
  // Predicated region
  $region10: #{tpu_custom_call.1} parent=0 // pred_check
    _
  $region11: #{tpu_custom_call.1} parent=0 // pred_check_branch
    %14 = sbr.rel (0) target = $region13
  $region12: #{tpu_custom_call.1} parent=0 // pred_region
    _
  $region13: #{tpu_custom_call.1} parent=0 // pred_fallthru
    _
  %v15 = vld [vmem:[%s2] sm:$0xf]
  %v16 = vld [vmem:[%s1] sm:$0x3]
  %s17 = sld [smem:[#allocation2]]
  %v18 = vstv %s17
  %19 = vmatprep.subr.mxu0 0.0
  %v20 = vand.u32 %v16, 4294901760
  %21 = vmatpush1.xpose.msra.mxu0 %v20
  %22 = vmatprep.subr.mxu0 0.0
  %23 = vmatpush1.xpose.msra.mxu0 0.0
  %24 = vmatprep.subr.mxu0 0.0
  %25 = vmatpush1.xpose.msra.mxu0 0.0
  %26 = vmatprep.subr.mxu0 0.0
  %27 = vmatpush1.xpose.msra.mxu0 0.0
  %28 = vmatprep.subr.mxu0 0.0
  %29 = vmatpush1.xpose.msra.mxu0 0.0
  %30 = vmatprep.subr.mxu0 0.0
  %31 = vmatpush1.xpose.msra.mxu0 0.0
  %32 = vmatprep.subr.mxu0 0.0
  %33 = vmatpush1.xpose.msra.mxu0 0.0
  %34 = vmatprep.subr.mxu0 0.0
  %35 = vmatpush1.xpose.msra.mxu0 0.0
  %36 = vmatprep.subr.mxu0 0.0
  %37 = vmatpush1.xpose.msra.mxu0 0.0
  %38 = vmatprep.subr.mxu0 0.0
  %39 = vmatpush1.xpose.msra.mxu0 0.0
  %40 = vmatprep.subr.mxu0 0.0
  %41 = vmatpush1.xpose.msra.mxu0 0.0
  %42 = vmatprep.subr.mxu0 0.0
  %43 = vmatpush1.xpose.msra.mxu0 0.0
  %44 = vmatprep.subr.mxu0 0.0
  %45 = vmatpush1.xpose.msra.mxu0 0.0
  %46 = vmatprep.subr.mxu0 0.0
  %47 = vmatpush1.xpose.msra.mxu0 0.0
  %48 = vmatprep.subr.mxu0 0.0
  %49 = vmatpush1.xpose.msra.mxu0 0.0
  %50 = vmatprep.subr.mxu0 0.0
  %51 = vmatpush1.xpose.msra.mxu0 0.0
  %52 = vmatprep.subr.mxu0 0.0
  %53 = vmatpush1.xpose.msra.mxu0 0.0
  %54 = vmatprep.subr.mxu0 0.0
  %55 = vmatpush1.xpose.msra.mxu0 0.0
  %56 = vmatprep.subr.mxu0 0.0
  %57 = vmatpush1.xpose.msra.mxu0 0.0
  %58 = vmatprep.subr.mxu0 0.0
  %59 = vmatpush1.xpose.msra.mxu0 0.0
  %60 = vmatprep.subr.mxu0 0.0
  %61 = vmatpush1.xpose.msra.mxu0 0.0
  %62 = vmatprep.subr.mxu0 0.0
  %63 = vmatpush1.xpose.msra.mxu0 0.0
  %64 = vmatprep.subr.mxu0 0.0
  %65 = vmatpush1.xpose.msra.mxu0 0.0
  %66 = vmatprep.subr.mxu0 0.0
  %67 = vmatpush1.xpose.msra.mxu0 0.0
  %68 = vmatprep.subr.mxu0 0.0
  %69 = vmatpush1.xpose.msra.mxu0 0.0
  %70 = vmatprep.subr.mxu0 0.0
  %71 = vmatpush1.xpose.msra.mxu0 0.0
  %72 = vmatprep.subr.mxu0 0.0
  %73 = vmatpush1.xpose.msra.mxu0 0.0
  %74 = vmatprep.subr.mxu0 0.0
  %75 = vmatpush1.xpose.msra.mxu0 0.0
  %76 = vmatprep.subr.mxu0 0.0
  %77 = vmatpush1.xpose.msra.mxu0 0.0
  %78 = vmatprep.subr.mxu0 0.0
  %79 = vmatpush1.xpose.msra.mxu0 0.0
  %80 = vmatprep.subr.mxu0 0.0
  %81 = vmatpush1.xpose.msra.mxu0 0.0
  %82 = vmatprep.subr.mxu0 0.0
  %83 = vmatpush1.xpose.msra.mxu0 0.0
  %84 = vmatprep.mubr.f32.mxu0 0.0
  %v85 = vand.u32 %v15, 4294901760
  %v86 = vsub.f32 %v15, %v85
  %v87 = vand.u32 %v86, 4294901760
  %v88 = vsub.f32 %v86, %v87
  %v89 = vand.u32 %v88, 4294901760
  %90 = vmatmul.mubr.f32.gmra.mrb[0].mxu0 %v89
  %v91 = vpop.f32.mrb[0].mxu0
  %v92 = vadd.f32 %v18, %v91
  %v93 = vpop.f32.mrb[0].mxu0
  %94 = vdwg.mxu0
  %95 = vmatprep.subr.mxu0 0.0
  %v96 = vand.u32 %v16, 4294901760
  %v97 = vsub.f32 %v16, %v96
  %v98 = vand.u32 %v97, 4294901760
  %v99 = vsub.f32 %v97, %v98
  %v100 = vand.u32 %v99, 4294901760
  %101 = vmatpush1.xpose.msra.mxu0 %v100
  %102 = vmatprep.subr.mxu0 0.0
  %103 = vmatpush1.xpose.msra.mxu0 0.0
  %104 = vmatprep.subr.mxu0 0.0
  %105 = vmatpush1.xpose.msra.mxu0 0.0
  %106 = vmatprep.subr.mxu0 0.0
  %107 = vmatpush1.xpose.msra.mxu0 0.0
  %108 = vmatprep.subr.mxu0 0.0
  %109 = vmatpush1.xpose.msra.mxu0 0.0
  %110 = vmatprep.subr.mxu0 0.0
  %111 = vmatpush1.xpose.msra.mxu0 0.0
  %112 = vmatprep.subr.mxu0 0.0
  %113 = vmatpush1.xpose.msra.mxu0 0.0
  %114 = vmatprep.subr.mxu0 0.0
  %115 = vmatpush1.xpose.msra.mxu0 0.0
  %116 = vmatprep.subr.mxu0 0.0
  %117 = vmatpush1.xpose.msra.mxu0 0.0
  %118 = vmatprep.subr.mxu0 0.0
  %119 = vmatpush1.xpose.msra.mxu0 0.0
  %120 = vmatprep.subr.mxu0 0.0
  %121 = vmatpush1.xpose.msra.mxu0 0.0
  %122 = vmatprep.subr.mxu0 0.0
  %123 = vmatpush1.xpose.msra.mxu0 0.0
  %124 = vmatprep.subr.mxu0 0.0
  %125 = vmatpush1.xpose.msra.mxu0 0.0
  %126 = vmatprep.subr.mxu0 0.0
  %127 = vmatpush1.xpose.msra.mxu0 0.0
  %128 = vmatprep.subr.mxu0 0.0
  %129 = vmatpush1.xpose.msra.mxu0 0.0
  %130 = vmatprep.subr.mxu0 0.0
  %131 = vmatpush1.xpose.msra.mxu0 0.0
  %132 = vmatprep.subr.mxu0 0.0
  %133 = vmatpush1.xpose.msra.mxu0 0.0
  %134 = vmatprep.subr.mxu0 0.0
  %135 = vmatpush1.xpose.msra.mxu0 0.0
  %136 = vmatprep.subr.mxu0 0.0
  %137 = vmatpush1.xpose.msra.mxu0 0.0
  %138 = vmatprep.subr.mxu0 0.0
  %139 = vmatpush1.xpose.msra.mxu0 0.0
  %140 = vmatprep.subr.mxu0 0.0
  %141 = vmatpush1.xpose.msra.mxu0 0.0
  %142 = vmatprep.subr.mxu0 0.0
  %143 = vmatpush1.xpose.msra.mxu0 0.0
  %144 = vmatprep.subr.mxu0 0.0
  %145 = vmatpush1.xpose.msra.mxu0 0.0
  %146 = vmatprep.subr.mxu0 0.0
  %147 = vmatpush1.xpose.msra.mxu0 0.0
  %148 = vmatprep.subr.mxu0 0.0
  %149 = vmatpush1.xpose.msra.mxu0 0.0
  %150 = vmatprep.subr.mxu0 0.0
  %151 = vmatpush1.xpose.msra.mxu0 0.0
  %152 = vmatprep.subr.mxu0 0.0
  %153 = vmatpush1.xpose.msra.mxu0 0.0
  %154 = vmatprep.subr.mxu0 0.0
  %155 = vmatpush1.xpose.msra.mxu0 0.0
  %156 = vmatprep.subr.mxu0 0.0
  %157 = vmatpush1.xpose.msra.mxu0 0.0
  %158 = vmatprep.subr.mxu0 0.0
  %159 = vmatpush1.xpose.msra.mxu0 0.0
  %160 = vmatprep.subr.mxu0 0.0
  %161 = vmatpush1.xpose.msra.mxu0 0.0
  %162 = vmatprep.subr.mxu0 0.0
  %163 = vmatpush1.xpose.msra.mxu0 0.0
  %164 = vmatprep.mubr.f32.mxu0 0.0
  %v165 = vand.u32 %v15, 4294901760
  %166 = vmatmul.mubr.f32.gmra.mrb[0].mxu0 %v165
  %v167 = vpop.f32.mrb[0].mxu0
  %v168 = vadd.f32 %v92, %v167
  %v169 = vpop.f32.mrb[0].mxu0
  %170 = vdwg.mxu0
  %171 = vmatprep.subr.mxu0 0.0
  %v172 = vand.u32 %v16, 4294901760
  %v173 = vsub.f32 %v16, %v172
  %174 = vmatpush1.xpose.msra.mxu0 %v173
  %175 = vmatprep.subr.mxu0 0.0
  %176 = vmatpush1.xpose.msra.mxu0 0.0
  %177 = vmatprep.subr.mxu0 0.0
  %178 = vmatpush1.xpose.msra.mxu0 0.0
  %179 = vmatprep.subr.mxu0 0.0
  %180 = vmatpush1.xpose.msra.mxu0 0.0
  %181 = vmatprep.subr.mxu0 0.0
  %182 = vmatpush1.xpose.msra.mxu0 0.0
  %183 = vmatprep.subr.mxu0 0.0
  %184 = vmatpush1.xpose.msra.mxu0 0.0
  %185 = vmatprep.subr.mxu0 0.0
  %186 = vmatpush1.xpose.msra.mxu0 0.0
  %187 = vmatprep.subr.mxu0 0.0
  %188 = vmatpush1.xpose.msra.mxu0 0.0
  %189 = vmatprep.subr.mxu0 0.0
  %190 = vmatpush1.xpose.msra.mxu0 0.0
  %191 = vmatprep.subr.mxu0 0.0
  %192 = vmatpush1.xpose.msra.mxu0 0.0
  %193 = vmatprep.subr.mxu0 0.0
  %194 = vmatpush1.xpose.msra.mxu0 0.0
  %195 = vmatprep.subr.mxu0 0.0
  %196 = vmatpush1.xpose.msra.mxu0 0.0
  %197 = vmatprep.subr.mxu0 0.0
  %198 = vmatpush1.xpose.msra.mxu0 0.0
  %199 = vmatprep.subr.mxu0 0.0
  %200 = vmatpush1.xpose.msra.mxu0 0.0
  %201 = vmatprep.subr.mxu0 0.0
  %202 = vmatpush1.xpose.msra.mxu0 0.0
  %203 = vmatprep.subr.mxu0 0.0
  %204 = vmatpush1.xpose.msra.mxu0 0.0
  %205 = vmatprep.subr.mxu0 0.0
  %206 = vmatpush1.xpose.msra.mxu0 0.0
  %207 = vmatprep.subr.mxu0 0.0
  %208 = vmatpush1.xpose.msra.mxu0 0.0
  %209 = vmatprep.subr.mxu0 0.0
  %210 = vmatpush1.xpose.msra.mxu0 0.0
  %211 = vmatprep.subr.mxu0 0.0
  %212 = vmatpush1.xpose.msra.mxu0 0.0
  %213 = vmatprep.subr.mxu0 0.0
  %214 = vmatpush1.xpose.msra.mxu0 0.0
  %215 = vmatprep.subr.mxu0 0.0
  %216 = vmatpush1.xpose.msra.mxu0 0.0
  %217 = vmatprep.subr.mxu0 0.0
  %218 = vmatpush1.xpose.msra.mxu0 0.0
  %219 = vmatprep.subr.mxu0 0.0
  %220 = vmatpush1.xpose.msra.mxu0 0.0
  %221 = vmatprep.subr.mxu0 0.0
  %222 = vmatpush1.xpose.msra.mxu0 0.0
  %223 = vmatprep.subr.mxu0 0.0
  %224 = vmatpush1.xpose.msra.mxu0 0.0
  %225 = vmatprep.subr.mxu0 0.0
  %226 = vmatpush1.xpose.msra.mxu0 0.0
  %227 = vmatprep.subr.mxu0 0.0
  %228 = vmatpush1.xpose.msra.mxu0 0.0
  %229 = vmatprep.subr.mxu0 0.0
  %230 = vmatpush1.xpose.msra.mxu0 0.0
  %231 = vmatprep.subr.mxu0 0.0
  %232 = vmatpush1.xpose.msra.mxu0 0.0
  %233 = vmatprep.subr.mxu0 0.0
  %234 = vmatpush1.xpose.msra.mxu0 0.0
  %235 = vmatprep.subr.mxu0 0.0
  %236 = vmatpush1.xpose.msra.mxu0 0.0
  %237 = vmatprep.mubr.f32.mxu0 0.0
  %v238 = vand.u32 %v15, 4294901760
  %v239 = vsub.f32 %v15, %v238
  %240 = vmatmul.mubr.f32.gmra.mrb[0].mxu0 %v239
  %v241 = vpop.f32.mrb[0].mxu0
  %v242 = vadd.f32 %v168, %v241
  %v243 = vpop.f32.mrb[0].mxu0
  %244 = vdwg.mxu0
  %245 = vmatprep.subr.mxu0 0.0
  %v246 = vand.u32 %v16, 4294901760
  %247 = vmatpush1.xpose.msra.mxu0 %v246
  %248 = vmatprep.subr.mxu0 0.0
  %249 = vmatpush1.xpose.msra.mxu0 0.0
  %250 = vmatprep.subr.mxu0 0.0
  %251 = vmatpush1.xpose.msra.mxu0 0.0
  %252 = vmatprep.subr.mxu0 0.0
  %253 = vmatpush1.xpose.msra.mxu0 0.0
  %254 = vmatprep.subr.mxu0 0.0
  %255 = vmatpush1.xpose.msra.mxu0 0.0
  %256 = vmatprep.subr.mxu0 0.0
  %257 = vmatpush1.xpose.msra.mxu0 0.0
  %258 = vmatprep.subr.mxu0 0.0
  %259 = vmatpush1.xpose.msra.mxu0 0.0
  %260 = vmatprep.subr.mxu0 0.0
  %261 = vmatpush1.xpose.msra.mxu0 0.0
  %262 = vmatprep.subr.mxu0 0.0
  %263 = vmatpush1.xpose.msra.mxu0 0.0
  %264 = vmatprep.subr.mxu0 0.0
  %265 = vmatpush1.xpose.msra.mxu0 0.0
  %266 = vmatprep.subr.mxu0 0.0
  %267 = vmatpush1.xpose.msra.mxu0 0.0
  %268 = vmatprep.subr.mxu0 0.0
  %269 = vmatpush1.xpose.msra.mxu0 0.0
  %270 = vmatprep.subr.mxu0 0.0
  %271 = vmatpush1.xpose.msra.mxu0 0.0
  %272 = vmatprep.subr.mxu0 0.0
  %273 = vmatpush1.xpose.msra.mxu0 0.0
  %274 = vmatprep.subr.mxu0 0.0
  %275 = vmatpush1.xpose.msra.mxu0 0.0
  %276 = vmatprep.subr.mxu0 0.0
  %277 = vmatpush1.xpose.msra.mxu0 0.0
  %278 = vmatprep.subr.mxu0 0.0
  %279 = vmatpush1.xpose.msra.mxu0 0.0
  %280 = vmatprep.subr.mxu0 0.0
  %281 = vmatpush1.xpose.msra.mxu0 0.0
  %282 = vmatprep.subr.mxu0 0.0
  %283 = vmatpush1.xpose.msra.mxu0 0.0
  %284 = vmatprep.subr.mxu0 0.0
  %285 = vmatpush1.xpose.msra.mxu0 0.0
  %286 = vmatprep.subr.mxu0 0.0
  %287 = vmatpush1.xpose.msra.mxu0 0.0
  %288 = vmatprep.subr.mxu0 0.0
  %289 = vmatpush1.xpose.msra.mxu0 0.0
  %290 = vmatprep.subr.mxu0 0.0
  %291 = vmatpush1.xpose.msra.mxu0 0.0
  %292 = vmatprep.subr.mxu0 0.0
  %293 = vmatpush1.xpose.msra.mxu0 0.0
  %294 = vmatprep.subr.mxu0 0.0
  %295 = vmatpush1.xpose.msra.mxu0 0.0
  %296 = vmatprep.subr.mxu0 0.0
  %297 = vmatpush1.xpose.msra.mxu0 0.0
  %298 = vmatprep.subr.mxu0 0.0
  %299 = vmatpush1.xpose.msra.mxu0 0.0
  %300 = vmatprep.subr.mxu0 0.0
  %301 = vmatpush1.xpose.msra.mxu0 0.0
  %302 = vmatprep.subr.mxu0 0.0
  %303 = vmatpush1.xpose.msra.mxu0 0.0
  %304 = vmatprep.subr.mxu0 0.0
  %305 = vmatpush1.xpose.msra.mxu0 0.0
  %306 = vmatprep.subr.mxu0 0.0
  %307 = vmatpush1.xpose.msra.mxu0 0.0
  %308 = vmatprep.subr.mxu0 0.0
  %309 = vmatpush1.xpose.msra.mxu0 0.0
  %310 = vmatprep.mubr.f32.mxu0 0.0
  %v311 = vand.u32 %v15, 4294901760
  %v312 = vsub.f32 %v15, %v311
  %v313 = vand.u32 %v312, 4294901760
  %314 = vmatmul.mubr.f32.gmra.mrb[0].mxu0 %v313
  %v315 = vpop.f32.mrb[0].mxu0
  %v316 = vadd.f32 %v242, %v315
  %v317 = vpop.f32.mrb[0].mxu0
  %318 = vdwg.mxu0
  %319 = vmatprep.subr.mxu0 0.0
  %v320 = vand.u32 %v16, 4294901760
  %v321 = vsub.f32 %v16, %v320
  %v322 = vand.u32 %v321, 4294901760
  %323 = vmatpush1.xpose.msra.mxu0 %v322
  %324 = vmatprep.subr.mxu0 0.0
  %325 = vmatpush1.xpose.msra.mxu0 0.0
  %326 = vmatprep.subr.mxu0 0.0
  %327 = vmatpush1.xpose.msra.mxu0 0.0
  %328 = vmatprep.subr.mxu0 0.0
  %329 = vmatpush1.xpose.msra.mxu0 0.0
  %330 = vmatprep.subr.mxu0 0.0
  %331 = vmatpush1.xpose.msra.mxu0 0.0
  %332 = vmatprep.subr.mxu0 0.0
  %333 = vmatpush1.xpose.msra.mxu0 0.0
  %334 = vmatprep.subr.mxu0 0.0
  %335 = vmatpush1.xpose.msra.mxu0 0.0
  %336 = vmatprep.subr.mxu0 0.0
  %337 = vmatpush1.xpose.msra.mxu0 0.0
  %338 = vmatprep.subr.mxu0 0.0
  %339 = vmatpush1.xpose.msra.mxu0 0.0
  %340 = vmatprep.subr.mxu0 0.0
  %341 = vmatpush1.xpose.msra.mxu0 0.0
  %342 = vmatprep.subr.mxu0 0.0
  %343 = vmatpush1.xpose.msra.mxu0 0.0
  %344 = vmatprep.subr.mxu0 0.0
  %345 = vmatpush1.xpose.msra.mxu0 0.0
  %346 = vmatprep.subr.mxu0 0.0
  %347 = vmatpush1.xpose.msra.mxu0 0.0
  %348 = vmatprep.subr.mxu0 0.0
  %349 = vmatpush1.xpose.msra.mxu0 0.0
  %350 = vmatprep.subr.mxu0 0.0
  %351 = vmatpush1.xpose.msra.mxu0 0.0
  %352 = vmatprep.subr.mxu0 0.0
  %353 = vmatpush1.xpose.msra.mxu0 0.0
  %354 = vmatprep.subr.mxu0 0.0
  %355 = vmatpush1.xpose.msra.mxu0 0.0
  %356 = vmatprep.subr.mxu0 0.0
  %357 = vmatpush1.xpose.msra.mxu0 0.0
  %358 = vmatprep.subr.mxu0 0.0
  %359 = vmatpush1.xpose.msra.mxu0 0.0
  %360 = vmatprep.subr.mxu0 0.0
  %361 = vmatpush1.xpose.msra.mxu0 0.0
  %362 = vmatprep.subr.mxu0 0.0
  %363 = vmatpush1.xpose.msra.mxu0 0.0
  %364 = vmatprep.subr.mxu0 0.0
  %365 = vmatpush1.xpose.msra.mxu0 0.0
  %366 = vmatprep.subr.mxu0 0.0
  %367 = vmatpush1.xpose.msra.mxu0 0.0
  %368 = vmatprep.subr.mxu0 0.0
  %369 = vmatpush1.xpose.msra.mxu0 0.0
  %370 = vmatprep.subr.mxu0 0.0
  %371 = vmatpush1.xpose.msra.mxu0 0.0
  %372 = vmatprep.subr.mxu0 0.0
  %373 = vmatpush1.xpose.msra.mxu0 0.0
  %374 = vmatprep.subr.mxu0 0.0
  %375 = vmatpush1.xpose.msra.mxu0 0.0
  %376 = vmatprep.subr.mxu0 0.0
  %377 = vmatpush1.xpose.msra.mxu0 0.0
  %378 = vmatprep.subr.mxu0 0.0
  %379 = vmatpush1.xpose.msra.mxu0 0.0
  %380 = vmatprep.subr.mxu0 0.0
  %381 = vmatpush1.xpose.msra.mxu0 0.0
  %382 = vmatprep.subr.mxu0 0.0
  %383 = vmatpush1.xpose.msra.mxu0 0.0
  %384 = vmatprep.subr.mxu0 0.0
  %385 = vmatpush1.xpose.msra.mxu0 0.0
  %386 = vmatprep.mubr.f32.mxu0 0.0
  %v387 = vand.u32 %v15, 4294901760
  %388 = vmatmul.mubr.f32.gmra.mrb[0].mxu0 %v387
  %v389 = vpop.f32.mrb[0].mxu0
  %v390 = vadd.f32 %v316, %v389
  %v391 = vpop.f32.mrb[0].mxu0
  %392 = vdwg.mxu0
  %393 = vmatprep.subr.mxu0 0.0
  %v394 = vand.u32 %v16, 4294901760
  %395 = vmatpush1.xpose.msra.mxu0 %v394
  %396 = vmatprep.subr.mxu0 0.0
  %397 = vmatpush1.xpose.msra.mxu0 0.0
  %398 = vmatprep.subr.mxu0 0.0
  %399 = vmatpush1.xpose.msra.mxu0 0.0
  %400 = vmatprep.subr.mxu0 0.0
  %401 = vmatpush1.xpose.msra.mxu0 0.0
  %402 = vmatprep.subr.mxu0 0.0
  %403 = vmatpush1.xpose.msra.mxu0 0.0
  %404 = vmatprep.subr.mxu0 0.0
  %405 = vmatpush1.xpose.msra.mxu0 0.0
  %406 = vmatprep.subr.mxu0 0.0
  %407 = vmatpush1.xpose.msra.mxu0 0.0
  %408 = vmatprep.subr.mxu0 0.0
  %409 = vmatpush1.xpose.msra.mxu0 0.0
  %410 = vmatprep.subr.mxu0 0.0
  %411 = vmatpush1.xpose.msra.mxu0 0.0
  %412 = vmatprep.subr.mxu0 0.0
  %413 = vmatpush1.xpose.msra.mxu0 0.0
  %414 = vmatprep.subr.mxu0 0.0
  %415 = vmatpush1.xpose.msra.mxu0 0.0
  %416 = vmatprep.subr.mxu0 0.0
  %417 = vmatpush1.xpose.msra.mxu0 0.0
  %418 = vmatprep.subr.mxu0 0.0
  %419 = vmatpush1.xpose.msra.mxu0 0.0
  %420 = vmatprep.subr.mxu0 0.0
  %421 = vmatpush1.xpose.msra.mxu0 0.0
  %422 = vmatprep.subr.mxu0 0.0
  %423 = vmatpush1.xpose.msra.mxu0 0.0
  %424 = vmatprep.subr.mxu0 0.0
  %425 = vmatpush1.xpose.msra.mxu0 0.0
  %426 = vmatprep.subr.mxu0 0.0
  %427 = vmatpush1.xpose.msra.mxu0 0.0
  %428 = vmatprep.subr.mxu0 0.0
  %429 = vmatpush1.xpose.msra.mxu0 0.0
  %430 = vmatprep.subr.mxu0 0.0
  %431 = vmatpush1.xpose.msra.mxu0 0.0
  %432 = vmatprep.subr.mxu0 0.0
  %433 = vmatpush1.xpose.msra.mxu0 0.0
  %434 = vmatprep.subr.mxu0 0.0
  %435 = vmatpush1.xpose.msra.mxu0 0.0
  %436 = vmatprep.subr.mxu0 0.0
  %437 = vmatpush1.xpose.msra.mxu0 0.0
  %438 = vmatprep.subr.mxu0 0.0
  %439 = vmatpush1.xpose.msra.mxu0 0.0
  %440 = vmatprep.subr.mxu0 0.0
  %441 = vmatpush1.xpose.msra.mxu0 0.0
  %442 = vmatprep.subr.mxu0 0.0
  %443 = vmatpush1.xpose.msra.mxu0 0.0
  %444 = vmatprep.subr.mxu0 0.0
  %445 = vmatpush1.xpose.msra.mxu0 0.0
  %446 = vmatprep.subr.mxu0 0.0
  %447 = vmatpush1.xpose.msra.mxu0 0.0
  %448 = vmatprep.subr.mxu0 0.0
  %449 = vmatpush1.xpose.msra.mxu0 0.0
  %450 = vmatprep.subr.mxu0 0.0
  %451 = vmatpush1.xpose.msra.mxu0 0.0
  %452 = vmatprep.subr.mxu0 0.0
  %453 = vmatpush1.xpose.msra.mxu0 0.0
  %454 = vmatprep.subr.mxu0 0.0
  %455 = vmatpush1.xpose.msra.mxu0 0.0
  %456 = vmatprep.subr.mxu0 0.0
  %457 = vmatpush1.xpose.msra.mxu0 0.0
  %458 = vmatprep.mubr.f32.mxu0 0.0
  %v459 = vand.u32 %v15, 4294901760
  %460 = vmatmul.mubr.f32.gmra.mrb[0].mxu0 %v459
  %v461 = vpop.f32.mrb[0].mxu0
  %v462 = vadd.f32 %v390, %v461
  %v463 = vpop.f32.mrb[0].mxu0
  %464 = vdwg.mxu0
  %v465 = vxor.u32 %v462, 2147483648
  %v466 = vmul.f32 %v465, 1.442695
  %v467 = vpow.pop %v466
  %v468 = vadd.f32 %v467, 1.0
  %v469 = vrcp.pop %v468
  %v470 = vmul.f32 1.0, %v469
  %vm471 = vcmask 11264
  %472 = vst.msk [vmem:[%s3] sm:$0xf] %vm471, %v470
  // Predicated region
  $region14: #{tpu_custom_call.1} parent=0 // pred_check
    _
  $region15: #{tpu_custom_call.1} parent=0 // pred_check_branch
    %474 = sbr.rel (0) target = $region17
  $region16: #{tpu_custom_call.1} parent=0 // pred_region
    _
  $region17: #{tpu_custom_call.1} parent=0 // pred_fallthru
    _
  // Predicated region
  $region18: #{tpu_custom_call.1} parent=0 // pred_check
    _
  $region19: #{tpu_custom_call.1} parent=0 // pred_check_branch
    %476 = sbr.rel (0) target = $region21
  $region20: #{tpu_custom_call.1} parent=0 // pred_region
    _
  $region21: #{tpu_custom_call.1} parent=0 // pred_fallthru
    _

</llo_original>
